<compile_context>
chip_gen: v7x
topology: tpu7x:2x2x1
jax: 0.10.0
libtpu: 0.0.40
codegen_flags: <defaults>
</compile_context>

<pallas_src>
import functools
import math

import jax
import jax.numpy as jnp
from jax.experimental import pallas as pl
from jax.experimental.pallas import tpu as pltpu

_LANE = 128          # vreg lane width
_SUBLANE = 8         # vreg sublane count (f32)
_NEG_BIG = -1e30     # finite "-inf" for padded vocab lanes
_VMEM_LIMIT = 32 * 1024 * 1024      # scoped VMEM we ask for (safe on v5e/v6e/v7x)
_VMEM_BUDGET = 24 * 1024 * 1024     # what the tile picker targets (headroom)


def _round_up(n: int, m: int) -> int:
    return ((n + m - 1) // m) * m


# ----------------------------------------------------------------------------
# Fused kernel: (tm, D) @ (D, Vp) matmul + bias + stable log_softmax over Vp
# ----------------------------------------------------------------------------
def _generator_kernel(x_ref, w_ref, b_ref, o_ref):
    # MXU matmul: bf16 x bf16 inputs, f32 accumulation (single MXU pass).
    logits = jnp.dot(
        x_ref[...].astype(jnp.bfloat16),
        w_ref[...],                                   # weights already bf16
        preferred_element_type=jnp.float32,
    )
    # Bias is f32; padded vocab lanes carry -1e30 so they vanish in the softmax.
    logits = logits + b_ref[...]

    # Numerically stable log-softmax, all in f32 (v5e has no bf16 VPU/EUP path).
    m = jnp.max(logits, axis=-1, keepdims=True)
    shifted = logits - m
    lse = jnp.log(jnp.sum(jnp.exp(shifted), axis=-1, keepdims=True))
    o_ref[...] = (shifted - lse).astype(o_ref.dtype)


def _pick_block_m(M: int, D: int, Vp: int, block_m: int) -> int:
    """Largest token tile (multiple of 8, <= block_m) whose double-buffered
    working set fits the VMEM budget."""
    tm = min(block_m, _round_up(M, _SUBLANE))

    def vmem_bytes(t):
        # 2 pipeline buffers for x tile and output tile; weights+bias resident
        # (same block every step) but conservatively counted double-buffered.
        return 2 * (t * D * 4 + t * Vp * 4) + 2 * (D * Vp * 2 + Vp * 4)

    while tm > _SUBLANE and vmem_bytes(tm) > _VMEM_BUDGET:
        tm = max(_SUBLANE, _round_up(tm // 2, _SUBLANE))
    return tm


# ----------------------------------------------------------------------------
# Wrapper: pad, tile over tokens, call the fused kernel, slice padding off
# ----------------------------------------------------------------------------
def generator_forward(x, w, b, *, block_m: int = 256):
    """log_softmax(x @ w + b, axis=-1).

    x : (..., D) float32 activations
    w : (D, V)   projection weights (nn.Linear weight transposed); cast to bf16
    b : (V,)     float32 bias
    """
    *lead, D = x.shape
    V = w.shape[1]

    x2d = x.reshape(-1, D).astype(jnp.float32)
    M = x2d.shape[0]

    Vp = _round_up(V, _LANE)                 # lane-dense (and mask-safe) vocab
    tm = _pick_block_m(M, D, Vp, block_m)    # VMEM-derived token tile
    Mp = _round_up(M, tm)

    if Mp != M:
        x2d = jnp.pad(x2d, ((0, Mp - M), (0, 0)))

    w_p = w.astype(jnp.bfloat16)
    b_row = jnp.asarray(b, jnp.float32).reshape(1, V)
    if Vp != V:
        w_p = jnp.pad(w_p, ((0, 0), (0, Vp - V)))
        b_row = jnp.pad(b_row, ((0, 0), (0, Vp - V)), constant_values=_NEG_BIG)

    grid = (Mp // tm,)

    cost = pl.CostEstimate(
        flops=2 * Mp * D * Vp,
        transcendentals=Mp * Vp,                       # the exp in logsumexp
        bytes_accessed=(Mp * D * 4 + D * Vp * 2 + Vp * 4 + Mp * Vp * 4),
    )

    out = pl.pallas_call(
        _generator_kernel,
        out_shape=jax.ShapeDtypeStruct((Mp, Vp), jnp.float32),
        grid=grid,
        in_specs=[
            pl.BlockSpec((tm, D), lambda i: (i, 0)),   # activations: tiled over M
            pl.BlockSpec((D, Vp), lambda i: (0, 0)),   # weights: resident
            pl.BlockSpec((1, Vp), lambda i: (0, 0)),   # bias: resident
        ],
        out_specs=pl.BlockSpec((tm, Vp), lambda i: (i, 0)),
        compiler_params=pltpu.CompilerParams(
            dimension_semantics=("parallel",),         # M tiles independent -> both TCs on v7x
            vmem_limit_bytes=_VMEM_LIMIT,
        ),
        cost_estimate=cost,
    )(x2d, w_p, b_row)

    # TODO(synk): if d_model grows beyond ~512, add a trailing K grid axis with a
    # f32 VMEM accumulator (init with the bias) instead of growing this block.
    out = out[:M, :V]
    return out.reshape(*lead, V)


# ----------------------------------------------------------------------------
# Driver
# ----------------------------------------------------------------------------
if __name__ == "__main__":
    D_MODEL = 32
    VOCAB = 1000          # deliberately NOT a multiple of 128 -> exercises pad+mask
    B, S = 2, 8

    key = jax.random.PRNGKey(0)
    k_w, k_b, k_x = jax.random.split(key, 3)

    # nn.Linear(d_model, vocab): y = x @ W^T + b.  Store W pre-transposed as
    # (d_model, vocab); weights handed to the kernel in bf16.
    bound = 1.0 / math.sqrt(D_MODEL)
    w = jax.random.uniform(k_w, (D_MODEL, VOCAB), jnp.float32, -bound, bound)
    b = jax.random.uniform(k_b, (VOCAB,), jnp.float32, -bound, bound)
    x = jax.random.normal(k_x, (B, S, D_MODEL), jnp.float32)

    fwd = jax.jit(functools.partial(generator_forward, block_m=256))
    out = jax.block_until_ready(fwd(x, w, b))

    assert out.shape == (B, S, VOCAB) and out.dtype == jnp.float32

    # Reference 1: same bf16 matmul inputs, f32 accumulation -> should match tightly.
    logits_bf16 = jnp.einsum(
        "bsd,dv->bsv",
        x.astype(jnp.bfloat16), w.astype(jnp.bfloat16),
        preferred_element_type=jnp.float32,
    ) + b
    ref_bf16 = jax.nn.log_softmax(logits_bf16, axis=-1)
    assert jnp.allclose(out, ref_bf16, atol=1e-4, rtol=1e-4), "mismatch vs bf16 reference"

    # Reference 2: full-f32 math -> only bf16 input-rounding error expected.
    ref_f32 = jax.nn.log_softmax(jnp.einsum("bsd,dv->bsv", x, w) + b, axis=-1)
    assert jnp.allclose(out, ref_f32, atol=3e-2, rtol=0), "mismatch vs f32 reference"

    # Rows are valid log-prob distributions.
    assert jnp.allclose(jnp.sum(jnp.exp(out), axis=-1), 1.0, atol=1e-3)

    print("KERNEL_OK")
</pallas_src>

<mosaic_0001>
module attributes {stable_mosaic.version = 11 : i64} {
  func.func @_generator_kernel(%arg0: i32, %arg1: memref<16x32xf32, #tpu.memory_space<vmem>>, %arg2: memref<32x1024xbf16, #tpu.memory_space<vmem>>, %arg3: memref<1x1024xf32, #tpu.memory_space<vmem>>, %arg4: memref<16x1024xf32, #tpu.memory_space<vmem>>) attributes {dimension_semantics = [#tpu.dimension_semantics<parallel>], iteration_bounds = array<i64: 1>, scalar_prefetch = 0 : i64, scratch_operands = 0 : i64, tpu.core_type = #tpu.core_type<tc>, window_params = [{transform_indices = @transform_0, window_bounds = array<i64: 16, 32>}, {pipeline_mode = #tpu.pipeline_mode<synchronous>, transform_indices = @transform_1, window_bounds = array<i64: 32, 1024>}, {pipeline_mode = #tpu.pipeline_mode<synchronous>, transform_indices = @transform_2, window_bounds = array<i64: 1, 1024>}, {transform_indices = @transform_3, window_bounds = array<i64: 16, 1024>}]} {
    %c0 = arith.constant 0 : index
    %c0_0 = arith.constant 0 : index
    %0 = vector.load %arg1[%c0, %c0_0] : memref<16x32xf32, #tpu.memory_space<vmem>>, vector<16x32xf32>
    %1 = arith.truncf %0 : vector<16x32xf32> to vector<16x32xbf16>
    %c0_1 = arith.constant 0 : index
    %c0_2 = arith.constant 0 : index
    %2 = vector.load %arg2[%c0_1, %c0_2] : memref<32x1024xbf16, #tpu.memory_space<vmem>>, vector<32x1024xbf16>
    %cst = arith.constant dense<0.000000e+00> : vector<16x1024xf32>
    %3 = tpu.matmul %1, %2, %cst {dimension_numbers = #tpu.dot_dimension_numbers<[1], [0], [0], [1], [0, 0, 1, 1], [], []>} : vector<16x32xbf16>, vector<32x1024xbf16>, vector<16x1024xf32> -> vector<16x1024xf32>
    %c0_3 = arith.constant 0 : index
    %c0_4 = arith.constant 0 : index
    %4 = vector.load %arg3[%c0_3, %c0_4] : memref<1x1024xf32, #tpu.memory_space<vmem>>, vector<1x1024xf32>
    %5 = vector.broadcast %4 : vector<1x1024xf32> to vector<16x1024xf32>
    %6 = arith.addf %3, %5 : vector<16x1024xf32>
    %cst_5 = arith.constant dense<0xFF800000> : vector<16xf32>
    %7 = vector.multi_reduction <maximumf>, %6, %cst_5 [1] : vector<16x1024xf32> to vector<16xf32>
    %8 = vector.shape_cast %7 : vector<16xf32> to vector<16x1xf32>
    %9 = vector.broadcast %8 : vector<16x1xf32> to vector<16x1024xf32>
    %10 = arith.subf %6, %9 : vector<16x1024xf32>
    %11 = math.exp %10 : vector<16x1024xf32>
    %cst_6 = arith.constant dense<0.000000e+00> : vector<16xf32>
    %12 = vector.multi_reduction <add>, %11, %cst_6 [1] : vector<16x1024xf32> to vector<16xf32>
    %13 = vector.shape_cast %12 : vector<16xf32> to vector<16x1xf32>
    %14 = math.log %13 : vector<16x1xf32>
    %15 = vector.broadcast %14 : vector<16x1xf32> to vector<16x1024xf32>
    %16 = arith.subf %10, %15 : vector<16x1024xf32>
    %c0_7 = arith.constant 0 : index
    %c0_8 = arith.constant 0 : index
    %17 = vector.load %arg4[%c0_7, %c0_8] : memref<16x1024xf32, #tpu.memory_space<vmem>>, vector<16x1024xf32>
    tpu.vector_store %arg4[%c0_7, %c0_8], %16 {strides = array<i32>} : memref<16x1024xf32, #tpu.memory_space<vmem>>, vector<16x1024xf32>,
    return
  }
  func.func @transform_0(%arg0: i32) -> (i32, i32) {
    %c0_i32 = arith.constant 0 : i32
    %c0_i32_0 = arith.constant 0 : i32
    return %arg0, %c0_i32 : i32, i32
  }
  func.func @transform_1(%arg0: i32) -> (i32, i32) {
    %c0_i32 = arith.constant 0 : i32
    %c0_i32_0 = arith.constant 0 : i32
    %c0_i32_1 = arith.constant 0 : i32
    return %c0_i32, %c0_i32_0 : i32, i32
  }
  func.func @transform_2(%arg0: i32) -> (i32, i32) {
    %c0_i32 = arith.constant 0 : i32
    %c0_i32_0 = arith.constant 0 : i32
    %c0_i32_1 = arith.constant 0 : i32
    return %c0_i32, %c0_i32_0 : i32, i32
  }
  func.func @transform_3(%arg0: i32) -> (i32, i32) {
    %c0_i32 = arith.constant 0 : i32
    %c0_i32_0 = arith.constant 0 : i32
    return %arg0, %c0_i32 : i32, i32
  }
}

</mosaic_0001>

<llo_original>
// kernel: generator_forward.1
$region0: #{generator_forward.1}
  #allocation0 [shape = 'u32[]', space=smem, size = 0x4, offset = 0x4, fixed_abs, tag = 'smem constant byte address 0x4 - core index']
  #allocation1 [shape = 'u32[144,128]{1,0:T(1,128)}', space=vmem, size = 0x12000, scoped, tag = 'internal scratch']
  %s0 = inlined_call_operand.vmem [shape: f32[16,32], index: 0, kind: input, shape index: {}]
  %s1 = inlined_call_operand.vmem [shape: bf16[32,1024], index: 1, kind: input, shape index: {}]
  %s2 = inlined_call_operand.vmem [shape: f32[1,1024], index: 2, kind: input, shape index: {}]
  %s3 = inlined_call_operand.vmem [shape: f32[16,1024], index: 3, kind: output, shape index: {}]
  %s4 = sld [smem:[#allocation0]]
  $region22: #{generator_forward.1} parent=0
    _
  %s6 = ssub.s32 1, %s4
  %s7 = scalar_select 0, %s6, %s4
  // Predicated region
  $region2: #{generator_forward.1} parent=0 // pred_check
    _
  $region3: #{generator_forward.1} parent=0 // pred_check_branch
    %9 = sbr.rel (0) target = $region5
  $region4: #{generator_forward.1} parent=0 // pred_region
    _
  $region5: #{generator_forward.1} parent=0 // pred_fallthru
    _
  // Predicated region
  $region6: #{generator_forward.1} parent=0 // pred_check
    _
  $region7: #{generator_forward.1} parent=0 // pred_check_branch
    %11 = sbr.rel (0) target = $region9
  $region8: #{generator_forward.1} parent=0 // pred_region
    _
  $region9: #{generator_forward.1} parent=0 // pred_fallthru
    _
  // Predicated region
  $region10: #{generator_forward.1} parent=0 // pred_check
    _
  $region11: #{generator_forward.1} parent=0 // pred_check_branch
    %13 = sbr.rel (0) target = $region13
  $region12: #{generator_forward.1} parent=0 // pred_region
    _
  $region13: #{generator_forward.1} parent=0 // pred_fallthru
    _
  %v15 = vld [vmem:[%s0] sm:$0xff]
  %v16 = vld [vmem:[%s0 + $0x8] sm:$0xff]
  %v17 = vpack.c.bf16 %v16, %v15
  %v18 = vld [vmem:[%s1] sm:$0xff]
  %v19 = vld [vmem:[%s1 + $0x8] sm:$0xff]
  %v20 = vld [vmem:[%s1 + $0x10] sm:$0xff]
  %v21 = vld [vmem:[%s1 + $0x18] sm:$0xff]
  %v22 = vld [vmem:[%s1 + $0x20] sm:$0xff]
  %v23 = vld [vmem:[%s1 + $0x28] sm:$0xff]
  %v24 = vld [vmem:[%s1 + $0x30] sm:$0xff]
  %v25 = vld [vmem:[%s1 + $0x38] sm:$0xff]
  %v26 = vld [vmem:[%s1 + $0x40] sm:$0xff]
  %v27 = vld [vmem:[%s1 + $0x48] sm:$0xff]
  %v28 = vld [vmem:[%s1 + $0x50] sm:$0xff]
  %v29 = vld [vmem:[%s1 + $0x58] sm:$0xff]
  %v30 = vld [vmem:[%s1 + $0x60] sm:$0xff]
  %v31 = vld [vmem:[%s1 + $0x68] sm:$0xff]
  %v32 = vld [vmem:[%s1 + $0x70] sm:$0xff]
  %v33 = vld [vmem:[%s1 + $0x78] sm:$0xff]
  %v34 = vld [vmem:[%s2] sm:$0xff]
  %v36 = vlaneseq
  %v37 = vshrl.u32 %v36, 7
  %v38 = vsub.s32 0, %v37
  %v39 = vrot.slane %v34, %v38
  %v40 = vlaneseq
  %v41 = vshrl.u32 %v40, 7
  %v42 = vsub.s32 1, %v41
  %v43 = vrot.slane %v34, %v42
  %v44 = vlaneseq
  %v45 = vshrl.u32 %v44, 7
  %v46 = vsub.s32 2, %v45
  %v47 = vrot.slane %v34, %v46
  %v48 = vlaneseq
  %v49 = vshrl.u32 %v48, 7
  %v50 = vsub.s32 3, %v49
  %v51 = vrot.slane %v34, %v50
  %v52 = vlaneseq
  %v53 = vshrl.u32 %v52, 7
  %v54 = vsub.s32 4, %v53
  %v55 = vrot.slane %v34, %v54
  %v56 = vlaneseq
  %v57 = vshrl.u32 %v56, 7
  %v58 = vsub.s32 5, %v57
  %v59 = vrot.slane %v34, %v58
  %v60 = vlaneseq
  %v61 = vshrl.u32 %v60, 7
  %v62 = vsub.s32 6, %v61
  %v63 = vrot.slane %v34, %v62
  %v64 = vlaneseq
  %v65 = vshrl.u32 %v64, 7
  %v66 = vsub.s32 7, %v65
  %v67 = vrot.slane %v34, %v66
  %v92 = vunpack.c.l.b16 %v18
  %v93 = vunpack.c.h.b16 %v18
  %v94 = vunpack.c.l.b16 %v19
  %v95 = vunpack.c.h.b16 %v19
  %v96 = vunpack.c.l.b16 %v20
  %v97 = vunpack.c.h.b16 %v20
  %v98 = vunpack.c.l.b16 %v21
  %v99 = vunpack.c.h.b16 %v21
  %v100 = vunpack.c.l.b16 %v22
  %v101 = vunpack.c.h.b16 %v22
  %v102 = vunpack.c.l.b16 %v23
  %v103 = vunpack.c.h.b16 %v23
  %v104 = vunpack.c.l.b16 %v24
  %v105 = vunpack.c.h.b16 %v24
  %v106 = vunpack.c.l.b16 %v25
  %v107 = vunpack.c.h.b16 %v25
  %v108 = vunpack.c.l.b16 %v26
  %v109 = vunpack.c.h.b16 %v26
  %v110 = vunpack.c.l.b16 %v27
  %v111 = vunpack.c.h.b16 %v27
  %v112 = vunpack.c.l.b16 %v28
  %v113 = vunpack.c.h.b16 %v28
  %v114 = vunpack.c.l.b16 %v29
  %v115 = vunpack.c.h.b16 %v29
  %v116 = vunpack.c.l.b16 %v30
  %v117 = vunpack.c.h.b16 %v30
  %v118 = vunpack.c.l.b16 %v31
  %v119 = vunpack.c.h.b16 %v31
  %v120 = vunpack.c.l.b16 %v32
  %v121 = vunpack.c.h.b16 %v32
  %v122 = vunpack.c.l.b16 %v33
  %v123 = vunpack.c.h.b16 %v33
  %v124 = vpack.c.b16 %v100, %v92
  %v125 = vpack.c.b16 %v101, %v93
  %v126 = vpack.c.b16 %v102, %v94
  %v127 = vpack.c.b16 %v103, %v95
  %v128 = vpack.c.b16 %v104, %v96
  %v129 = vpack.c.b16 %v105, %v97
  %v130 = vpack.c.b16 %v106, %v98
  %v131 = vpack.c.b16 %v107, %v99
  %v132 = vpack.c.b16 %v116, %v108
  %v133 = vpack.c.b16 %v117, %v109
  %v134 = vpack.c.b16 %v118, %v110
  %v135 = vpack.c.b16 %v119, %v111
  %v136 = vpack.c.b16 %v120, %v112
  %v137 = vpack.c.b16 %v121, %v113
  %v138 = vpack.c.b16 %v122, %v114
  %v139 = vpack.c.b16 %v123, %v115
  %vm156 = vcmask 261120
  %v158 = vsel %vm156, %v17, 0
  %160 = vmatprep.subr.bf16.mxu0 %v125
  %161 = vmatpush1.bf16.msra.mxu0 %v124
  %162 = vmatprep.subr.bf16.mxu0 %v133
  %163 = vmatpush1.bf16.msra.mxu0 %v132
  %164 = vmatprep.subr.bf16.mxu0 0
  %165 = vmatpush1.bf16.msra.mxu0 0
  %166 = vmatprep.subr.bf16.mxu0 0
  %167 = vmatpush1.bf16.msra.mxu0 0
  %168 = vmatprep.subr.bf16.mxu0 0
  %169 = vmatpush1.bf16.msra.mxu0 0
  %170 = vmatprep.subr.bf16.mxu0 0
  %171 = vmatpush1.bf16.msra.mxu0 0
  %172 = vmatprep.subr.bf16.mxu0 0
  %173 = vmatpush1.bf16.msra.mxu0 0
  %174 = vmatprep.subr.bf16.mxu0 0
  %175 = vmatpush1.bf16.msra.mxu0 0
  %176 = vmatprep.subr.bf16.mxu0 0
  %177 = vmatpush1.bf16.msra.mxu0 0
  %178 = vmatprep.subr.bf16.mxu0 0
  %179 = vmatpush1.bf16.msra.mxu0 0
  %180 = vmatprep.subr.bf16.mxu0 0
  %181 = vmatpush1.bf16.msra.mxu0 0
  %182 = vmatprep.subr.bf16.mxu0 0
  %183 = vmatpush1.bf16.msra.mxu0 0
  %184 = vmatprep.subr.bf16.mxu0 0
  %185 = vmatpush1.bf16.msra.mxu0 0
  %186 = vmatprep.subr.bf16.mxu0 0
  %187 = vmatpush1.bf16.msra.mxu0 0
  %188 = vmatprep.subr.bf16.mxu0 0
  %189 = vmatpush1.bf16.msra.mxu0 0
  %190 = vmatprep.subr.bf16.mxu0 0
  %191 = vmatpush1.bf16.msra.mxu0 0
  %192 = vmatprep.mubr.bf16.mxu0 0
  %193 = vmatmul.mubr.bf16.gmra.mrb[0].mxu0 %v158
  %v194 = vpop.f32.mrb[0].mxu0
  %v195 = vadd.f32 %v39, %v194
  %v196 = vpop.f32.mrb[0].mxu0
  %v197 = vadd.f32 %v43, %v196
  %v198 = vpop.f32.mrb[0].mxu0
  %v199 = vadd.f32 %v39, %v198
  %v200 = vpop.f32.mrb[0].mxu0
  %v201 = vadd.f32 %v43, %v200
  %202 = vdwg.mxu0
  %203 = vmatprep.subr.bf16.mxu0 %v127
  %204 = vmatpush1.bf16.msra.mxu0 %v126
  %205 = vmatprep.subr.bf16.mxu0 %v135
  %206 = vmatpush1.bf16.msra.mxu0 %v134
  %207 = vmatprep.subr.bf16.mxu0 0
  %208 = vmatpush1.bf16.msra.mxu0 0
  %209 = vmatprep.subr.bf16.mxu0 0
  %210 = vmatpush1.bf16.msra.mxu0 0
  %211 = vmatprep.subr.bf16.mxu0 0
  %212 = vmatpush1.bf16.msra.mxu0 0
  %213 = vmatprep.subr.bf16.mxu0 0
  %214 = vmatpush1.bf16.msra.mxu0 0
  %215 = vmatprep.subr.bf16.mxu0 0
  %216 = vmatpush1.bf16.msra.mxu0 0
  %217 = vmatprep.subr.bf16.mxu0 0
  %218 = vmatpush1.bf16.msra.mxu0 0
  %219 = vmatprep.subr.bf16.mxu0 0
  %220 = vmatpush1.bf16.msra.mxu0 0
  %221 = vmatprep.subr.bf16.mxu0 0
  %222 = vmatpush1.bf16.msra.mxu0 0
  %223 = vmatprep.subr.bf16.mxu0 0
  %224 = vmatpush1.bf16.msra.mxu0 0
  %225 = vmatprep.subr.bf16.mxu0 0
  %226 = vmatpush1.bf16.msra.mxu0 0
  %227 = vmatprep.subr.bf16.mxu0 0
  %228 = vmatpush1.bf16.msra.mxu0 0
  %229 = vmatprep.subr.bf16.mxu0 0
  %230 = vmatpush1.bf16.msra.mxu0 0
  %231 = vmatprep.subr.bf16.mxu0 0
  %232 = vmatpush1.bf16.msra.mxu0 0
  %233 = vmatprep.subr.bf16.mxu0 0
  %234 = vmatpush1.bf16.msra.mxu0 0
  %235 = vmatprep.mubr.bf16.mxu0 0
  %236 = vmatmul.mubr.bf16.gmra.mrb[0].mxu0 %v158
  %v237 = vpop.f32.mrb[0].mxu0
  %v238 = vadd.f32 %v47, %v237
  %v239 = vpop.f32.mrb[0].mxu0
  %v240 = vadd.f32 %v51, %v239
  %v241 = vpop.f32.mrb[0].mxu0
  %v242 = vadd.f32 %v47, %v241
  %v243 = vpop.f32.mrb[0].mxu0
  %v244 = vadd.f32 %v51, %v243
  %245 = vdwg.mxu0
  %246 = vmatprep.subr.bf16.mxu0 %v129
  %247 = vmatpush1.bf16.msra.mxu0 %v128
  %248 = vmatprep.subr.bf16.mxu0 %v137
  %249 = vmatpush1.bf16.msra.mxu0 %v136
  %250 = vmatprep.subr.bf16.mxu0 0
  %251 = vmatpush1.bf16.msra.mxu0 0
  %252 = vmatprep.subr.bf16.mxu0 0
  %253 = vmatpush1.bf16.msra.mxu0 0
  %254 = vmatprep.subr.bf16.mxu0 0
  %255 = vmatpush1.bf16.msra.mxu0 0
  %256 = vmatprep.subr.bf16.mxu0 0
  %257 = vmatpush1.bf16.msra.mxu0 0
  %258 = vmatprep.subr.bf16.mxu0 0
  %259 = vmatpush1.bf16.msra.mxu0 0
  %260 = vmatprep.subr.bf16.mxu0 0
  %261 = vmatpush1.bf16.msra.mxu0 0
  %262 = vmatprep.subr.bf16.mxu0 0
  %263 = vmatpush1.bf16.msra.mxu0 0
  %264 = vmatprep.subr.bf16.mxu0 0
  %265 = vmatpush1.bf16.msra.mxu0 0
  %266 = vmatprep.subr.bf16.mxu0 0
  %267 = vmatpush1.bf16.msra.mxu0 0
  %268 = vmatprep.subr.bf16.mxu0 0
  %269 = vmatpush1.bf16.msra.mxu0 0
  %270 = vmatprep.subr.bf16.mxu0 0
  %271 = vmatpush1.bf16.msra.mxu0 0
  %272 = vmatprep.subr.bf16.mxu0 0
  %273 = vmatpush1.bf16.msra.mxu0 0
  %274 = vmatprep.subr.bf16.mxu0 0
  %275 = vmatpush1.bf16.msra.mxu0 0
  %276 = vmatprep.subr.bf16.mxu0 0
  %277 = vmatpush1.bf16.msra.mxu0 0
  %278 = vmatprep.mubr.bf16.mxu0 0
  %279 = vmatmul.mubr.bf16.gmra.mrb[0].mxu0 %v158
  %v280 = vpop.f32.mrb[0].mxu0
  %v281 = vadd.f32 %v55, %v280
  %v282 = vpop.f32.mrb[0].mxu0
  %v283 = vadd.f32 %v59, %v282
  %v284 = vpop.f32.mrb[0].mxu0
  %v285 = vadd.f32 %v55, %v284
  %v286 = vpop.f32.mrb[0].mxu0
  %v287 = vadd.f32 %v59, %v286
  %288 = vdwg.mxu0
  %289 = vmatprep.subr.bf16.mxu0 %v131
  %290 = vmatpush1.bf16.msra.mxu0 %v130
  %291 = vmatprep.subr.bf16.mxu0 %v139
  %292 = vmatpush1.bf16.msra.mxu0 %v138
  %293 = vmatprep.subr.bf16.mxu0 0
  %294 = vmatpush1.bf16.msra.mxu0 0
  %295 = vmatprep.subr.bf16.mxu0 0
  %296 = vmatpush1.bf16.msra.mxu0 0
  %297 = vmatprep.subr.bf16.mxu0 0
  %298 = vmatpush1.bf16.msra.mxu0 0
  %299 = vmatprep.subr.bf16.mxu0 0
  %300 = vmatpush1.bf16.msra.mxu0 0
  %301 = vmatprep.subr.bf16.mxu0 0
  %302 = vmatpush1.bf16.msra.mxu0 0
  %303 = vmatprep.subr.bf16.mxu0 0
  %304 = vmatpush1.bf16.msra.mxu0 0
  %305 = vmatprep.subr.bf16.mxu0 0
  %306 = vmatpush1.bf16.msra.mxu0 0
  %307 = vmatprep.subr.bf16.mxu0 0
  %308 = vmatpush1.bf16.msra.mxu0 0
  %309 = vmatprep.subr.bf16.mxu0 0
  %310 = vmatpush1.bf16.msra.mxu0 0
  %311 = vmatprep.subr.bf16.mxu0 0
  %312 = vmatpush1.bf16.msra.mxu0 0
  %313 = vmatprep.subr.bf16.mxu0 0
  %314 = vmatpush1.bf16.msra.mxu0 0
  %315 = vmatprep.subr.bf16.mxu0 0
  %316 = vmatpush1.bf16.msra.mxu0 0
  %317 = vmatprep.subr.bf16.mxu0 0
  %318 = vmatpush1.bf16.msra.mxu0 0
  %319 = vmatprep.subr.bf16.mxu0 0
  %320 = vmatpush1.bf16.msra.mxu0 0
  %321 = vmatprep.mubr.bf16.mxu0 0
  %322 = vmatmul.mubr.bf16.gmra.mrb[0].mxu0 %v158
  %v323 = vpop.f32.mrb[0].mxu0
  %v324 = vadd.f32 %v63, %v323
  %v325 = vpop.f32.mrb[0].mxu0
  %v326 = vadd.f32 %v67, %v325
  %v327 = vpop.f32.mrb[0].mxu0
  %v328 = vadd.f32 %v63, %v327
  %v329 = vpop.f32.mrb[0].mxu0
  %v330 = vadd.f32 %v67, %v329
  %331 = vdwg.mxu0
  %v332 = vmax.f32 %v195, %v238
  %v333 = vmax.f32 %v197, %v240
  %v334 = vmax.f32 %v332, %v281
  %v335 = vmax.f32 %v333, %v283
  %v336 = vmax.f32 %v334, %v324
  %v337 = vmax.f32 %v335, %v326
  %v338 = vmax.f32 %v336, %v337
  %339 = vmax.xlane.f32.xlu0 %v338
  %v340 = vpop.xlane.xlu0 %339
  %v341 = vmax.f32 %v199, %v242
  %v342 = vmax.f32 %v201, %v244
  %v343 = vmax.f32 %v341, %v285
  %v344 = vmax.f32 %v342, %v287
  %v345 = vmax.f32 %v343, %v328
  %v346 = vmax.f32 %v344, %v330
  %v347 = vmax.f32 %v345, %v346
  %348 = vmax.xlane.f32.xlu0 %v347
  %v349 = vpop.xlane.xlu0 %348
  %v350 = vsub.f32 %v195, %v340
  %v351 = vsub.f32 %v197, %v340
  %v352 = vsub.f32 %v238, %v340
  %v353 = vsub.f32 %v240, %v340
  %v354 = vsub.f32 %v281, %v340
  %v355 = vsub.f32 %v283, %v340
  %v356 = vsub.f32 %v324, %v340
  %v357 = vsub.f32 %v326, %v340
  %v358 = vsub.f32 %v199, %v349
  %v359 = vsub.f32 %v201, %v349
  %v360 = vsub.f32 %v242, %v349
  %v361 = vsub.f32 %v244, %v349
  %v362 = vsub.f32 %v285, %v349
  %v363 = vsub.f32 %v287, %v349
  %v364 = vsub.f32 %v328, %v349
  %v365 = vsub.f32 %v330, %v349
  %v366 = vmul.f32 %v350, 1.442695
  %v367 = vpow.pop %v366
  %v368 = vmul.f32 %v351, 1.442695
  %v369 = vpow.pop %v368
  %v370 = vmul.f32 %v352, 1.442695
  %v371 = vpow.pop %v370
  %v372 = vmul.f32 %v353, 1.442695
  %v373 = vpow.pop %v372
  %v374 = vmul.f32 %v354, 1.442695
  %v375 = vpow.pop %v374
  %v376 = vmul.f32 %v355, 1.442695
  %v377 = vpow.pop %v376
  %v378 = vmul.f32 %v356, 1.442695
  %v379 = vpow.pop %v378
  %v380 = vmul.f32 %v357, 1.442695
  %v381 = vpow.pop %v380
  %v382 = vmul.f32 %v358, 1.442695
  %v383 = vpow.pop %v382
  %v384 = vmul.f32 %v359, 1.442695
  %v385 = vpow.pop %v384
  %v386 = vmul.f32 %v360, 1.442695
  %v387 = vpow.pop %v386
  %v388 = vmul.f32 %v361, 1.442695
  %v389 = vpow.pop %v388
  %v390 = vmul.f32 %v362, 1.442695
  %v391 = vpow.pop %v390
  %v392 = vmul.f32 %v363, 1.442695
  %v393 = vpow.pop %v392
  %v394 = vmul.f32 %v364, 1.442695
  %v395 = vpow.pop %v394
  %v396 = vmul.f32 %v365, 1.442695
  %v397 = vpow.pop %v396
  %v398 = vadd.f32 %v367, %v369
  %v399 = vadd.f32 %v398, %v371
  %v400 = vadd.f32 %v399, %v373
  %v401 = vadd.f32 %v400, %v375
  %v402 = vadd.f32 %v401, %v377
  %v403 = vadd.f32 %v402, %v379
  %v404 = vadd.f32 %v403, %v381
  %405 = vadd.xlane.f32.xlu0 %v404
  %v406 = vpop.xlane.xlu0 %405
  %v407 = vadd.f32 %v383, %v385
  %v408 = vadd.f32 %v407, %v387
  %v409 = vadd.f32 %v408, %v389
  %v410 = vadd.f32 %v409, %v391
  %v411 = vadd.f32 %v410, %v393
  %v412 = vadd.f32 %v411, %v395
  %v413 = vadd.f32 %v412, %v397
  %414 = vadd.xlane.f32.xlu0 %v413
  %v415 = vpop.xlane.xlu0 %414
  %v416 = vlog2.pop %v406
  %v417 = vmul.f32 %v416, 0.6931472
  %v418 = vlog2.pop %v415
  %v419 = vmul.f32 %v418, 0.6931472
  %v420 = vsub.f32 %v350, %v417
  %v421 = vsub.f32 %v351, %v417
  %v422 = vsub.f32 %v352, %v417
  %v423 = vsub.f32 %v353, %v417
  %v424 = vsub.f32 %v354, %v417
  %v425 = vsub.f32 %v355, %v417
  %v426 = vsub.f32 %v356, %v417
  %v427 = vsub.f32 %v357, %v417
  %v428 = vsub.f32 %v358, %v419
  %v429 = vsub.f32 %v359, %v419
  %v430 = vsub.f32 %v360, %v419
  %v431 = vsub.f32 %v361, %v419
  %v432 = vsub.f32 %v362, %v419
  %v433 = vsub.f32 %v363, %v419
  %v434 = vsub.f32 %v364, %v419
  %v435 = vsub.f32 %v365, %v419
  %436 = vst [vmem:[%s3] sm:$0xff] %v420
  %437 = vst [vmem:[%s3 + $0x8] sm:$0xff] %v421
  %438 = vst [vmem:[%s3 + $0x10] sm:$0xff] %v422
  %439 = vst [vmem:[%s3 + $0x18] sm:$0xff] %v423
  %440 = vst [vmem:[%s3 + $0x20] sm:$0xff] %v424
  %441 = vst [vmem:[%s3 + $0x28] sm:$0xff] %v425
  %442 = vst [vmem:[%s3 + $0x30] sm:$0xff] %v426
  %443 = vst [vmem:[%s3 + $0x38] sm:$0xff] %v427
  %444 = vst [vmem:[%s3 + $0x40] sm:$0xff] %v428
  %445 = vst [vmem:[%s3 + $0x48] sm:$0xff] %v429
  %446 = vst [vmem:[%s3 + $0x50] sm:$0xff] %v430
  %447 = vst [vmem:[%s3 + $0x58] sm:$0xff] %v431
  %448 = vst [vmem:[%s3 + $0x60] sm:$0xff] %v432
  %449 = vst [vmem:[%s3 + $0x68] sm:$0xff] %v433
  %450 = vst [vmem:[%s3 + $0x70] sm:$0xff] %v434
  %451 = vst [vmem:[%s3 + $0x78] sm:$0xff] %v435
  // Predicated region
  $region14: #{generator_forward.1} parent=0 // pred_check
    _
  $region15: #{generator_forward.1} parent=0 // pred_check_branch
    %453 = sbr.rel (0) target = $region17
  $region16: #{generator_forward.1} parent=0 // pred_region
    _
  $region17: #{generator_forward.1} parent=0 // pred_fallthru
    _
  // Predicated region
  $region18: #{generator_forward.1} parent=0 // pred_check
    _
  $region19: #{generator_forward.1} parent=0 // pred_check_branch
    %455 = sbr.rel (0) target = $region21
  $region20: #{generator_forward.1} parent=0 // pred_region
    _
  $region21: #{generator_forward.1} parent=0 // pred_fallthru
    _

</llo_original>
